<compile_context>
chip_gen: v6e
topology: v6e:2x2x1
jax: 0.10.0
libtpu: 0.0.40
codegen_flags: <defaults>
</compile_context>

<pallas_src>
import jax
import jax.numpy as jnp
from jax.experimental import pallas as pl
from jax.experimental.pallas import tpu as pltpu


def _round_up(a, b):
    return (a + b - 1) // b * b


def _encode_kernel(x_ref, w_ref, o_ref):
    # x_ref: (tn, thw) VMEM   w_ref: (1, Cout, 1) VMEM   o_ref: (tn, Cout, thw) VMEM
    # Single fused broadcast multiply + one dense full-block store (VPU only).
    o_ref[...] = x_ref[...][:, None, :] * w_ref[...]


def encoder_forward(x_nchw, weight, *, target_vmem_bytes=8 * 1024 * 1024):
    """1x1 Conv2d(1, Cout, bias=False).  x: (N,1,H,W), weight: (Cout,1,1,1).

    Returns (N, Cout, H, W), matching torch.nn.Conv2d(1, Cout, 1, bias=False).
    """
    n, cin, h, w = x_nchw.shape
    assert cin == 1, "Encoder has a single input channel"
    cout = weight.shape[0]
    assert weight.shape == (cout, cin, 1, 1)

    dtype = x_nchw.dtype
    ebytes = jnp.dtype(dtype).itemsize
    sub = 8 * (4 // ebytes)          # sublane rows per tile: 8 f32 / 16 bf16 / 32 int8
    hw = h * w

    # Free reshapes (Cin == 1); weight becomes a tiny (1, Cout, 1) VMEM operand.
    x2d = x_nchw.reshape(n, hw)
    w3d = weight.reshape(1, cout, 1).astype(dtype)

    # Batch-row tile: full N when small, else a multiple of 8 (block-shape rule).
    tn = n if n <= 8 else 8

    # Per-lane VMEM bytes, INCLUDING sublane padding of the buffers, for the
    # double-buffered input block + output block.
    bytes_per_lane = 2 * ebytes * (_round_up(tn, sub) + tn * _round_up(cout, sub))

    if hw <= 128:
        tile_hw = hw                               # last dim == full dim (allowed)
    else:
        tile_hw = (target_vmem_bytes // max(bytes_per_lane, 1)) // 128 * 128
        tile_hw = max(128, min(tile_hw, _round_up(hw, 128)))
        # Ensure >= 2 grid steps when possible so v7x's 2 TensorCores both work.
        if pl.cdiv(n, tn) * pl.cdiv(hw, tile_hw) < 2 and tile_hw > 128:
            tile_hw = max(128, _round_up(pl.cdiv(hw, 2), 128))

    grid = (pl.cdiv(n, tn), pl.cdiv(hw, tile_hw))  # ragged tails -> masked blocks

    out = pl.pallas_call(
        _encode_kernel,
        out_shape=jax.ShapeDtypeStruct((n, cout, hw), dtype),
        grid_spec=pltpu.PrefetchScalarGridSpec(
            num_scalar_prefetch=0,
            grid=grid,
            in_specs=[
                # Lane-dense input slab (tn, tile_hw).
                pl.BlockSpec((tn, tile_hw), lambda i, j: (i, j)),
                # Tiny weight vector, constant block index (fetched once).
                pl.BlockSpec((1, cout, 1), lambda i, j: (0, 0, 0)),
            ],
            # Output written directly in NCHW-compatible (N, Cout, H*W) layout.
            out_specs=pl.BlockSpec((tn, cout, tile_hw), lambda i, j: (i, 0, j)),
        ),
        compiler_params=pltpu.CompilerParams(
            # Embarrassingly parallel grid: shards across v7x's 2 TensorCores.
            dimension_semantics=("parallel", "parallel"),
        ),
        cost_estimate=pl.CostEstimate(
            flops=n * cout * hw,
            transcendentals=0,
            bytes_accessed=n * (1 + cout) * hw * ebytes,
        ),
    )(x2d, w3d)

    return out.reshape(n, cout, h, w)              # free reshape, no transpose


if __name__ == "__main__":
    key = jax.random.PRNGKey(0)
    kx, kw = jax.random.split(key)

    # Shapes implied by the module: input (N, 1, H, W); window = Cout.
    N, CIN, H, W = 2, 1, 16, 16
    WINDOW = 4

    x = jax.random.normal(kx, (N, CIN, H, W), dtype=jnp.float32)
    # Conv2d weight shape: (window, 1, 1, 1).  (cfg.TRAIN.ONE_INIT would make
    # this all-ones; random keeps the check nontrivial.)
    weight = jax.random.normal(kw, (WINDOW, CIN, 1, 1), dtype=jnp.float32)

    out = jax.block_until_ready(encoder_forward(x, weight))
    ref = jnp.einsum("nchw,oc->nohw", x, weight.reshape(WINDOW, CIN))
    assert out.shape == (N, WINDOW, H, W)
    assert jnp.allclose(out, ref, atol=1e-5, rtol=1e-5)

    # Ragged shape (N=3, H*W=180): exercises the masked partial boundary blocks
    # that replaced the old pad + slice tail path.
    x2 = jax.random.normal(kx, (3, CIN, 9, 20), dtype=jnp.float32)
    out2 = jax.block_until_ready(encoder_forward(x2, weight))
    ref2 = jnp.einsum("nchw,oc->nohw", x2, weight.reshape(WINDOW, CIN))
    assert out2.shape == (3, WINDOW, 9, 20)
    assert jnp.allclose(out2, ref2, atol=1e-5, rtol=1e-5)

    print("KERNEL_OK")
</pallas_src>

<mosaic_0001>
module attributes {stable_mosaic.version = 11 : i64} {
  func.func @_encode_kernel(%arg0: i32, %arg1: i32, %arg2: memref<2x128xf32, #tpu.memory_space<vmem>>, %arg3: memref<1x4x1xf32, #tpu.memory_space<vmem>>, %arg4: memref<2x4x128xf32, #tpu.memory_space<vmem>>) attributes {dimension_semantics = [#tpu.dimension_semantics<parallel>, #tpu.dimension_semantics<parallel>], iteration_bounds = array<i64: 1, 2>, scalar_prefetch = 0 : i64, scratch_operands = 0 : i64, tpu.core_type = #tpu.core_type<tc>, window_params = [{transform_indices = @transform_0, window_bounds = array<i64: 2, 128>}, {pipeline_mode = #tpu.pipeline_mode<synchronous>, transform_indices = @transform_1, window_bounds = array<i64: 1, 4, 1>}, {transform_indices = @transform_2, window_bounds = array<i64: 2, 4, 128>}]} {
    %c0 = arith.constant 0 : index
    %c0_0 = arith.constant 0 : index
    %0 = vector.load %arg2[%c0, %c0_0] : memref<2x128xf32, #tpu.memory_space<vmem>>, vector<2x128xf32>
    %1 = vector.shape_cast %0 : vector<2x128xf32> to vector<2x1x128xf32>
    %c0_1 = arith.constant 0 : index
    %c0_2 = arith.constant 0 : index
    %c0_3 = arith.constant 0 : index
    %2 = vector.load %arg3[%c0_1, %c0_2, %c0_3] : memref<1x4x1xf32, #tpu.memory_space<vmem>>, vector<1x4x1xf32>
    %3 = vector.broadcast %1 : vector<2x1x128xf32> to vector<2x4x128xf32>
    %4 = vector.broadcast %2 : vector<1x4x1xf32> to vector<2x4x128xf32>
    %5 = arith.mulf %3, %4 : vector<2x4x128xf32>
    %c0_4 = arith.constant 0 : index
    %c0_5 = arith.constant 0 : index
    %c0_6 = arith.constant 0 : index
    %6 = vector.load %arg4[%c0_4, %c0_5, %c0_6] : memref<2x4x128xf32, #tpu.memory_space<vmem>>, vector<2x4x128xf32>
    tpu.vector_store %arg4[%c0_4, %c0_5, %c0_6], %5 {strides = array<i32>} : memref<2x4x128xf32, #tpu.memory_space<vmem>>, vector<2x4x128xf32>,
    return
  }
  func.func @transform_0(%arg0: i32, %arg1: i32) -> (i32, i32) {
    %c0_i32 = arith.constant 0 : i32
    return %arg0, %arg1 : i32, i32
  }
  func.func @transform_1(%arg0: i32, %arg1: i32) -> (i32, i32, i32) {
    %c0_i32 = arith.constant 0 : i32
    %c0_i32_0 = arith.constant 0 : i32
    %c0_i32_1 = arith.constant 0 : i32
    %c0_i32_2 = arith.constant 0 : i32
    return %c0_i32, %c0_i32_0, %c0_i32_1 : i32, i32, i32
  }
  func.func @transform_2(%arg0: i32, %arg1: i32) -> (i32, i32, i32) {
    %c0_i32 = arith.constant 0 : i32
    %c0_i32_0 = arith.constant 0 : i32
    return %arg0, %c0_i32, %arg1 : i32, i32, i32
  }
}

</mosaic_0001>

<llo_original>
// kernel: tpu_custom_call.1
$region0: #{tpu_custom_call.1}
  #allocation0 [shape = 'u32[]', space=smem, size = 0x4, offset = 0x4, fixed_abs, tag = 'smem constant byte address 0x4 - core index']
  #allocation1 [shape = 'u32[144,128]{1,0:T(1,128)}', space=vmem, size = 0x12000, scoped, tag = 'internal scratch']
  %s0 = inlined_call_operand.vmem [shape: f32[2,256], index: 0, kind: input, shape index: {}]
  %s1 = inlined_call_operand.vmem [shape: f32[1,4,1], index: 1, kind: input, shape index: {}]
  %s2 = inlined_call_operand.hbm [shape: f32[2,4,256], index: 2, kind: output, shape index: {}]
  %s3 = sld [smem:[#allocation0]]
  $region41: #{tpu_custom_call.1} parent=0
    _
  %s5 = ssub.s32 1, %s3
  %s6 = scalar_select 0, %s5, %s3
  $region1: #{tpu_custom_call.1} parent=0
    #allocation2 [shape = 'u8[8192]{0}', space=vmem, size = 0x2000, scoped, tag = 'output window, operand 0']
    #allocation3 [shape = 's32[2]{0}', space=sflag, size = 0x8, scoped, tag = 'scoped memory for tpu_custom_call.1']
    %7 = vsyncpa [#allocation3], 0
    %s8 = scalar_lea.sflag [#allocation3], 1
    %9 = vsyncpa %s8, 0
    loop: start=0, step=1, limit=4
    $region2: #{tpu_custom_call.1} parent=1 // loop_pre_header
      _
    $region3: #{tpu_custom_call.1} parent=1 // loop_header
      %s11 = sphi 0, %s15
      %p12 = scmp.ge.s32.totalorder %s11, 4
      %s18 = sphi 0, %s30
      %s19 = sphi 0, %s26
      %s20 = sphi 0, %s18
      %s21 = sphi 0, %s19
      %s22 = sphi 0, %s20
      %s23 = sphi 0, %s21
      %s35 = sphi 0, %s37
      %s38 = sphi 0, %s35
      %s39 = sphi 0, %s38
      %s55 = sphi 0, %s39
      %s59 = sphi 0, %s59
      %s61 = sphi 0, %s59
      %s62 = sphi 0, %s61
      %s76 = sphi 0, %s62
      %s84 = sphi 0, %s86
      %s87 = sphi 0, %s84
      %s88 = sphi 0, %s87
      %s104 = sphi 0, %s88
    $region4: #{tpu_custom_call.1} parent=1 // loop_header_branch
      %14 = sbr.rel (%p12) target = $region8
    $region5: #{tpu_custom_call.1} parent=1 // loop_body
      %s16 = ssub.s32 %s11, 1
      %s17 = ssub.s32 %s11, 2
      %s24 = sadd.s32 1, %s19
      %p25 = scmp.ge.s32.totalorder %s24, 2
      %s26 = scalar_select %p25, 0, %s24
      %s27 = sadd.s32 1, %s18
      %s28 = scalar_select %p25, %s27, %s18
      %p29 = scmp.ge.s32.totalorder %s28, 1
      %s30 = scalar_select %p29, 0, %s28
      %s31 = ssub.s32 %s18, %s30
      %s32 = ssub.s32 %s19, %s26
      %s33 = sor.u32 %s31, %s32
      %p34 = scmp.eq.s32.totalorder %s33, 0
      %s36 = sadd.s32 %s35, 1
      %s37 = scalar_select %p34, %s35, %s36
      %p40 = pneg %p34
      %p41 = scmp.eq.s32.totalorder %s11, 1
      %p42 = por %p40, %p41
      %p43 = scmp.ne.s32.totalorder %s35, %s38
      %p44 = scmp.eq.s32.totalorder %s11, 0
      %p45 = por %p43, %p44
      %p46 = scmp.ne.s32.totalorder %s35, %s38
      %p47 = scmp.eq.s32.totalorder %s16, 1
      %p48 = por %p46, %p47
      %p49 = scmp.ne.s32.totalorder %s38, %s39
      %p50 = scmp.eq.s32.totalorder %s16, 0
      %p51 = por %p49, %p50
      %p52 = scmp.ne.s32.totalorder %s38, %s39
      %p53 = scmp.eq.s32.totalorder %s17, 1
      %p54 = por %p52, %p53
      %p56 = scmp.ne.s32.totalorder %s39, %s55
      %p57 = scmp.eq.s32.totalorder %s17, 0
      %p58 = por %p56, %p57
      %s60 = sadd.s32 %s59, 1
      %p63 = scmp.eq.s32.totalorder %s11, 1
      %p64 = scmp.ne.s32.totalorder %s59, %s61
      %p65 = scmp.eq.s32.totalorder %s11, 0
      %p66 = por %p64, %p65
      %p67 = scmp.ne.s32.totalorder %s59, %s61
      %p68 = scmp.eq.s32.totalorder %s16, 1
      %p69 = por %p67, %p68
      %p70 = scmp.ne.s32.totalorder %s61, %s62
      %p71 = scmp.eq.s32.totalorder %s16, 0
      %p72 = por %p70, %p71
      %p73 = scmp.ne.s32.totalorder %s61, %s62
      %p74 = scmp.eq.s32.totalorder %s17, 1
      %p75 = por %p73, %p74
      %p77 = scmp.ne.s32.totalorder %s62, %s76
      %p78 = scmp.eq.s32.totalorder %s17, 0
      %p79 = por %p77, %p78
      %s80 = ssub.s32 %s18, %s30
      %s81 = ssub.s32 %s19, %s26
      %s82 = sor.u32 %s80, %s81
      %p83 = scmp.eq.s32.totalorder %s82, 0
      %s85 = sadd.s32 %s84, 1
      %s86 = scalar_select %p83, %s84, %s85
      %p89 = pneg %p83
      %p90 = scmp.eq.s32.totalorder %s11, 1
      %p91 = por %p89, %p90
      %p92 = scmp.ne.s32.totalorder %s84, %s87
      %p93 = scmp.eq.s32.totalorder %s11, 0
      %p94 = por %p92, %p93
      %p95 = scmp.ne.s32.totalorder %s84, %s87
      %p96 = scmp.eq.s32.totalorder %s16, 1
      %p97 = por %p95, %p96
      %p98 = scmp.ne.s32.totalorder %s87, %s88
      %p99 = scmp.eq.s32.totalorder %s16, 0
      %p100 = por %p98, %p99
      %p101 = scmp.ne.s32.totalorder %s87, %s88
      %p102 = scmp.eq.s32.totalorder %s17, 1
      %p103 = por %p101, %p102
      %p105 = scmp.ne.s32.totalorder %s88, %s104
      %p106 = scmp.eq.s32.totalorder %s17, 0
      %p107 = por %p105, %p106
      %p108 = scmp.le.s32.totalorder 1, %s11
      %p109 = scmp.lt.s32.totalorder %s11, 3
      %p110 = pnand %p108, %p109
      %p111 = pneg %p110
      // Predicated region
      $region9: #{tpu_custom_call.1} parent=5 // pred_check
        _
      $region10: #{tpu_custom_call.1} parent=5 // pred_check_branch
        %113 = sbr.rel (%p110) target = $region12
      $region11: #{tpu_custom_call.1} parent=5 // pred_region
        %s114 = ssub.s32 %s11, 1
        // Predicated region
        $region13: #{tpu_custom_call.1} parent=11 // pred_check
          %p115 = pneg %p72
        $region14: #{tpu_custom_call.1} parent=11 // pred_check_branch
          %117 = sbr.rel (%p115) target = $region16
        $region15: #{tpu_custom_call.1} parent=11 // pred_region
          _
        $region16: #{tpu_custom_call.1} parent=11 // pred_fallthru
          _
      $region12: #{tpu_custom_call.1} parent=5 // pred_fallthru
        _
      %p118 = scmp.lt.s32.totalorder %s11, 2
      // Predicated region
      $region17: #{tpu_custom_call.1} parent=5 // pred_check
        %p119 = pneg %p118
      $region18: #{tpu_custom_call.1} parent=5 // pred_check_branch
        %121 = sbr.rel (%p119) target = $region20
      $region19: #{tpu_custom_call.1} parent=5 // pred_region
        // Predicated region
        $region21: #{tpu_custom_call.1} parent=19 // pred_check
          %p122 = pneg %p45
        $region22: #{tpu_custom_call.1} parent=19 // pred_check_branch
          %124 = sbr.rel (%p122) target = $region24
        $region23: #{tpu_custom_call.1} parent=19 // pred_region
          %p125 = scmp.lt.s32.totalorder %s18, 0
          %s126 = scalar_select %p125, %s18, 0
          %p127 = scmp.lt.s32.totalorder %s19, 1
          %s128 = scalar_select %p127, %s19, 1
          %s129 = smul.addr %s126, 2
          %s130 = sadd.s32 %s128, %s129
          %s131 = smul.addr %s130, 2
          %s132 = scalar_lea.vmem %s0, %s131
        $region24: #{tpu_custom_call.1} parent=19 // pred_fallthru
          _
      $region20: #{tpu_custom_call.1} parent=5 // pred_fallthru
        _
      %p133 = scmp.le.s32.totalorder 1, %s11
      %p134 = scmp.lt.s32.totalorder %s11, 3
      %p135 = pnand %p133, %p134
      %p136 = pneg %p135
      // Predicated region
      $region25: #{tpu_custom_call.1} parent=5 // pred_check
        _
      $region26: #{tpu_custom_call.1} parent=5 // pred_check_branch
        %138 = sbr.rel (%p135) target = $region28
      $region27: #{tpu_custom_call.1} parent=5 // pred_region
        %s139 = ssub.s32 %s11, 1
        %p140 = scmp.lt.s32.totalorder %s20, 0
        %s141 = scalar_select %p140, %s20, 0
        %p142 = scmp.lt.s32.totalorder %s21, 1
        %s143 = scalar_select %p142, %s21, 1
        %s144 = smul.addr %s141, 2
        %s145 = sadd.s32 %s143, %s144
        %s146 = smul.addr %s145, 2
        %s147 = scalar_lea.vmem %s0, %s146
        %p148 = pneg %p51
        %p149 = pneg %p48
        %p150 = pneg %p72
        %p151 = pneg %p69
        %p152 = pneg %p100
        %p153 = pneg %p97
        %s154 = sand.u32 %s87, 1
        %s155 = scalar_lea.sflag [#allocation3], %s154
        %s156 = sand.u32 %s87, 1
        %s157 = smul.addr %s156, 8
        %s158 = scalar_lea.vmem [#allocation2], %s157
        %p159 = scmp.lt.s32.totalorder %s20, 0
        %s160 = scalar_select %p159, %s20, 0
        %p161 = scmp.lt.s32.totalorder %s21, 1
        %s162 = scalar_select %p161, %s21, 1
        %s163 = smul.addr %s160, 2
        %s164 = sadd.s32 %s162, %s163
        %s165 = smul.addr %s164, 2
        %s166 = scalar_lea.vmem %s0, %s165
        %s167 = smul.u32 2, %s20
        %v168 = vld [vmem:[%s166] sm:$0x3]
        %v171 = vunpack.c.l.s4 1966171168
        %v172 = vunpack.c.0.s8 %v171
        %v173 = vlaneseq
        %v174 = vshrl.u32 %v173, 7
        %v175 = vsub.s32 %v172, %v174
        %v176 = vrot.slane %v168, %v175
        %v177 = vcombine.high %v176, %v176
        %v179 = vunpack.c.l.s4 1966171168
        %v180 = vunpack.c.0.s8 %v179
        %v181 = vlaneseq
        %v182 = vshrl.u32 %v181, 7
        %v183 = vsub.s32 %v180, %v182
        %v184 = vrot.slane %v176, %v183
        %v186 = vunpack.c.l.s4 1966171168
        %v187 = vunpack.c.0.s8 %v186
        %v188 = vlaneseq
        %v189 = vshrl.u32 %v188, 7
        %v190 = vsub.s32 %v187, %v189
        %v191 = vrot.slane %v177, %v190
        %v192 = vld [vmem:[%s1] sm:$0xf]
        %v193 = vlaneseq
        %v194 = vshrl.u32 %v193, 7
        %v195 = vsub.s32 0, %v194
        %v196 = vrot.slane %v184, %v195
        %v197 = vlaneseq
        %v198 = vshrl.u32 %v197, 7
        %v199 = vsub.s32 0, %v198
        %v200 = vrot.slane %v191, %v199
        %204 = vset.pattern.permute.xlu0 0
        %205 = vperm.xlu0 %204, %v192
        %v206 = vpop.permute.xlu0 %205
        %v208 = vmul.f32 %v196, %v206
        %v209 = vmul.f32 %v200, %v206
        %210 = vst [vmem:[%s158] sm:$0xf] %v208
        %211 = vst [vmem:[%s158 + $0x4] sm:$0xf] %v209
        %s212 = sand.u32 %s87, 1
        %s213 = scalar_lea.sflag [#allocation3], %s212
        %s214 = sand.u32 %s87, 1
        %s215 = smul.addr %s214, 8
        %s216 = scalar_lea.vmem [#allocation2], %s215
        // Predicated region
        $region29: #{tpu_custom_call.1} parent=27 // pred_check
          %p217 = pneg %p97
        $region30: #{tpu_custom_call.1} parent=27 // pred_check_branch
          %219 = sbr.rel (%p217) target = $region32
        $region31: #{tpu_custom_call.1} parent=27 // pred_region
          %s220 = smul.u32 2, %s20
          %s222 = ssub.s32 128, 128
          %223 = vsyncadd %s213, %s222
          %s224 = smul.addr %s220, 2
          %s225 = sadd.s32 %s21, %s224
          %s226 = smul.addr %s225, 64
          %s227 = scalar_lea.hbm %s2, %s226
          %s228 = sshll.u32 %s216, 4
          %s229 = int_to_ptr.vmem [resolvable:$true] %s228
          %234 = dma.vmem_to_hbm [thread:$0]  %s229, 128, %s227, %s213, 64, 128, 4
        $region32: #{tpu_custom_call.1} parent=27 // pred_fallthru
          _
      $region28: #{tpu_custom_call.1} parent=5 // pred_fallthru
        _
      %p235 = scmp.le.s32.totalorder 2, %s11
      // Predicated region
      $region33: #{tpu_custom_call.1} parent=5 // pred_check
        %p236 = pneg %p235
      $region34: #{tpu_custom_call.1} parent=5 // pred_check_branch
        %238 = sbr.rel (%p236) target = $region36
      $region35: #{tpu_custom_call.1} parent=5 // pred_region
        %s239 = ssub.s32 %s11, 2
        // Predicated region
        $region37: #{tpu_custom_call.1} parent=35 // pred_check
          %p240 = pneg %p103
        $region38: #{tpu_custom_call.1} parent=35 // pred_check_branch
          %242 = sbr.rel (%p240) target = $region40
        $region39: #{tpu_custom_call.1} parent=35 // pred_region
          %s243 = sand.u32 %s88, 1
          %s244 = scalar_lea.sflag [#allocation3], %s243
          %s245 = sand.u32 %s88, 1
          %s246 = smul.addr %s245, 8
          %s247 = scalar_lea.vmem [#allocation2], %s246
          %248 = dma.done %s244, 128
        $region40: #{tpu_custom_call.1} parent=35 // pred_fallthru
          _
      $region36: #{tpu_custom_call.1} parent=5 // pred_fallthru
        _
    $region6: #{tpu_custom_call.1} parent=1 // loop_footer
      %s15 = sadd.s32 1, %s11
    $region7: #{tpu_custom_call.1} parent=1 // loop_footer_branch
      %10 = sbr.rel target = $region3
    $region8: #{tpu_custom_call.1} parent=1 // loop_exit
      _
    %249 = vsyncpa [#allocation3], 1
    %s250 = scalar_lea.sflag [#allocation3], 1
    %251 = vsyncpa %s250, 1

</llo_original>
